<compile_context>
chip_gen: v5e
topology: v5e:2x2
jax: 0.10.0
libtpu: 0.0.40
codegen_flags: <defaults>
</compile_context>

<pallas_src>
import jax
import jax.numpy as jnp
from jax.experimental import pallas as pl
from jax.experimental.pallas import tpu as pltpu


def matmul_relu_kernel(x_ref, w_ref, o_ref):
    # MXU matmul with f32 accumulation, ReLU on the VPU in f32, then cast.
    acc = jnp.dot(x_ref[...], w_ref[...], preferred_element_type=jnp.float32)
    o_ref[...] = jnp.maximum(acc, 0.0).astype(o_ref.dtype)


def my_model_forward(x, weight, *, m_tile=2048, gridless_rows=1024,
                     use_bf16_operands=False, out_dtype=None):
    M, K = x.shape
    Kw, N = weight.shape
    assert K == Kw, "inner dims must match"

    out_dtype = jnp.dtype(x.dtype if out_dtype is None else out_dtype)

    if use_bf16_operands:
        # Halves streamed HBM bytes (kernel is bandwidth-bound); accumulation
        # and ReLU stay in f32 inside the kernel. Numerics differ slightly
        # from the f32 PyTorch reference.
        x = x.astype(jnp.bfloat16)
        weight = weight.astype(jnp.bfloat16)

    op_bytes = jnp.dtype(x.dtype).itemsize
    cost = pl.CostEstimate(
        flops=2 * M * N * K,
        transcendentals=0,
        bytes_accessed=(M * K + K * N) * op_bytes + M * N * out_dtype.itemsize,
    )

    if M <= gridless_rows:
        # Single-block path: whole operands live in VMEM, one MXU matmul +
        # VPU relu, no grid / pipelining machinery. Worst case (1024 rows,
        # f32 in + f32 out) is ~1.1 MiB — trivially inside every generation's
        # scoped-VMEM default.
        return pl.pallas_call(
            matmul_relu_kernel,
            out_shape=jax.ShapeDtypeStruct((M, N), out_dtype),
            in_specs=[
                pl.BlockSpec(memory_space=pltpu.MemorySpace.VMEM),
                pl.BlockSpec(memory_space=pltpu.MemorySpace.VMEM),
            ],
            out_specs=pl.BlockSpec(memory_space=pltpu.MemorySpace.VMEM),
            cost_estimate=cost,
        )(x, weight)

    # Tiled path: tile along M only (K = N = 128 already match the MXU tile;
    # re-tiling K/N would add complexity with zero gain — kernel is HBM-bound).
    m_tile = min(m_tile, 4096)  # keep v5e's 16 MiB scoped VMEM comfortable
    num_blocks = pl.cdiv(M, m_tile)
    if num_blocks < 2:
        # Keep >= 2 grid steps so the "parallel" M axis can shard across both
        # TensorCores on v7x.
        m_tile = max(8, ((M + 1) // 2 + 7) // 8 * 8)
        num_blocks = pl.cdiv(M, m_tile)

    return pl.pallas_call(
        matmul_relu_kernel,
        out_shape=jax.ShapeDtypeStruct((M, N), out_dtype),
        grid=(num_blocks,),
        in_specs=[
            pl.BlockSpec((m_tile, K), lambda i: (i, 0)),
            # Constant operand: keep the 128x128 weight resident in VMEM,
            # fetched once, no per-step pipelining buffer.
            pl.BlockSpec(memory_space=pltpu.MemorySpace.VMEM),
        ],
        out_specs=pl.BlockSpec((m_tile, N), lambda i: (i, 0)),
        compiler_params=pltpu.CompilerParams(dimension_semantics=("parallel",)),
        cost_estimate=cost,
    )(x, weight)


if __name__ == "__main__":
    key = jax.random.PRNGKey(0)
    kx, kw, kx2 = jax.random.split(key, 3)

    # Module defines weight = torch.randn(128, 128); x must have last dim 128.
    K, N = 128, 128
    weight = jax.random.normal(kw, (K, N), dtype=jnp.float32)

    # 1) Small M -> gridless single-block path (matches PyTorch f32 numerics).
    M_small = 8
    x_small = jax.random.normal(kx, (M_small, K), dtype=jnp.float32)
    out_small = jax.block_until_ready(my_model_forward(x_small, weight))
    ref_small = jnp.maximum(jnp.dot(x_small, weight), 0.0)
    assert out_small.shape == (M_small, N)
    assert jnp.allclose(out_small, ref_small, atol=1e-4, rtol=1e-4)

    # 2) Ragged larger M -> tiled path with pl.cdiv grid (edge block clipped).
    M_big = 2050
    x_big = jax.random.normal(kx2, (M_big, K), dtype=jnp.float32)
    out_big = jax.block_until_ready(my_model_forward(x_big, weight))
    ref_big = jnp.maximum(jnp.dot(x_big, weight), 0.0)
    assert out_big.shape == (M_big, N)
    assert jnp.allclose(out_big, ref_big, atol=1e-4, rtol=1e-4)

    # 3) bf16-operand fast path (relaxed tolerance: bf16 inputs vs f32 ref).
    out_bf16 = jax.block_until_ready(
        my_model_forward(x_small, weight, use_bf16_operands=True,
                         out_dtype=jnp.float32))
    assert out_bf16.shape == (M_small, N)
    assert jnp.allclose(out_bf16, ref_small, atol=0.5, rtol=5e-2)

    print("KERNEL_OK")
</pallas_src>

<mosaic_0001>
module attributes {stable_mosaic.version = 11 : i64} {
  func.func @matmul_relu_kernel(%arg0: memref<8x128xf32, #tpu.memory_space<vmem>>, %arg1: memref<128x128xf32, #tpu.memory_space<vmem>>, %arg2: memref<8x128xf32, #tpu.memory_space<vmem>>) attributes {dimension_semantics = [], scalar_prefetch = 0 : i64, scratch_operands = 0 : i64, tpu.core_type = #tpu.core_type<tc>} {
    %c0 = arith.constant 0 : index
    %c0_0 = arith.constant 0 : index
    %0 = vector.load %arg0[%c0, %c0_0] : memref<8x128xf32, #tpu.memory_space<vmem>>, vector<8x128xf32>
    %c0_1 = arith.constant 0 : index
    %c0_2 = arith.constant 0 : index
    %1 = vector.load %arg1[%c0_1, %c0_2] : memref<128x128xf32, #tpu.memory_space<vmem>>, vector<128x128xf32>
    %cst = arith.constant dense<0.000000e+00> : vector<8x128xf32>
    %2 = tpu.matmul %0, %1, %cst {dimension_numbers = #tpu.dot_dimension_numbers<[1], [0], [0], [1], [0, 0, 1, 1], [], []>} : vector<8x128xf32>, vector<128x128xf32>, vector<8x128xf32> -> vector<8x128xf32>
    %cst_3 = arith.constant 0.000000e+00 : f32
    %3 = vector.broadcast %cst_3 : f32 to vector<8x128xf32>
    %4 = arith.maximumf %2, %3 : vector<8x128xf32>
    %c0_4 = arith.constant 0 : index
    %c0_5 = arith.constant 0 : index
    %5 = vector.load %arg2[%c0_4, %c0_5] : memref<8x128xf32, #tpu.memory_space<vmem>>, vector<8x128xf32>
    tpu.vector_store %arg2[%c0_4, %c0_5], %4 {strides = array<i32>} : memref<8x128xf32, #tpu.memory_space<vmem>>, vector<8x128xf32>,
    return
  }
}

</mosaic_0001>

<llo_original>
// kernel: tpu_custom_call.1
$region0: #{tpu_custom_call.1}
  #allocation0 [shape = 'u32[]', space=smem, size = 0x4, offset = 0x4, fixed_abs, tag = 'smem constant byte address 0x4 - core index']
  #allocation1 [shape = 'u32[72,128]{1,0:T(1,128)}', space=vmem, size = 0x9000, scoped, tag = 'internal scratch']
  %s0 = inlined_call_operand.hbm [shape: f32[8,128], index: 0, kind: input, shape index: {}]
  %s1 = inlined_call_operand.hbm [shape: f32[128,128], index: 1, kind: input, shape index: {}]
  %s2 = inlined_call_operand.hbm [shape: f32[8,128], index: 2, kind: output, shape index: {}]
  %s3 = sld [smem:[#allocation0]]
  $region26: #{tpu_custom_call.1} parent=0
    _
  %s5 = ssub.s32 1, %s3
  %s6 = scalar_select 0, %s5, %s3
  $region1: #{tpu_custom_call.1} parent=0
    #allocation2 [shape = 'u8[4096]{0}', space=vmem, size = 0x1000, scoped, tag = 'input window, operand 0, single buffered']
    #allocation3 [shape = 's32[1]{0}', space=sflag, size = 0x4, scoped, tag = 'scoped memory for tpu_custom_call.1']
    #allocation4 [shape = 's32[1]{0}', space=sflag, size = 0x4, scoped, tag = 'scoped memory for tpu_custom_call.1']
    #allocation5 [shape = 'u8[65536]{0}', space=vmem, size = 0x10000, scoped, tag = 'input window, operand 1, single buffered']
    #allocation6 [shape = 's32[1]{0}', space=sflag, size = 0x4, scoped, tag = 'scoped memory for tpu_custom_call.1']
    #allocation7 [shape = 'u8[4096]{0}', space=vmem, size = 0x1000, scoped, tag = 'output window, operand 0, single buffered']
    %7 = vsyncpa [#allocation3], 0
    %8 = vsyncpa [#allocation6], 0
    %9 = vsyncpa [#allocation4], 0
    // Predicated region
    $region2: #{tpu_custom_call.1} parent=1 // pred_check
      _
    $region3: #{tpu_custom_call.1} parent=1 // pred_check_branch
      %11 = sbr.rel (0) target = $region5
    $region4: #{tpu_custom_call.1} parent=1 // pred_region
      %13 = vsyncadd [#allocation3], 0
      %s15 = sshll.u32 %s0, 4
      %s16 = int_to_ptr.hbm [resolvable:$true] %s15
      %s17 = sshll.u32 [#allocation2], 4
      %s18 = int_to_ptr.vmem [resolvable:$true] %s17
      %20 = dma.hbm_to_vmem [thread:$0]  %s16, 128, %s18, [#allocation3]
    $region5: #{tpu_custom_call.1} parent=1 // pred_fallthru
      _
    // Predicated region
    $region6: #{tpu_custom_call.1} parent=1 // pred_check
      _
    $region7: #{tpu_custom_call.1} parent=1 // pred_check_branch
      %22 = sbr.rel (0) target = $region9
    $region8: #{tpu_custom_call.1} parent=1 // pred_region
      %24 = vsyncadd [#allocation6], 0
      %s25 = sshll.u32 %s1, 4
      %s26 = int_to_ptr.hbm [resolvable:$true] %s25
      %s27 = sshll.u32 [#allocation5], 4
      %s28 = int_to_ptr.vmem [resolvable:$true] %s27
      %33 = dma.hbm_to_vmem [thread:$0]  %s26, 2048, %s28, [#allocation6], 128, 128, 8
    $region9: #{tpu_custom_call.1} parent=1 // pred_fallthru
      _
    // Predicated region
    $region10: #{tpu_custom_call.1} parent=1 // pred_check
      _
    $region11: #{tpu_custom_call.1} parent=1 // pred_check_branch
      %35 = sbr.rel (0) target = $region13
    $region12: #{tpu_custom_call.1} parent=1 // pred_region
      %37 = dma.done [#allocation3], 128
    $region13: #{tpu_custom_call.1} parent=1 // pred_fallthru
      _
    // Predicated region
    $region14: #{tpu_custom_call.1} parent=1 // pred_check
      _
    $region15: #{tpu_custom_call.1} parent=1 // pred_check_branch
      %39 = sbr.rel (0) target = $region17
    $region16: #{tpu_custom_call.1} parent=1 // pred_region
      %41 = dma.done [#allocation6], 2048
    $region17: #{tpu_custom_call.1} parent=1 // pred_fallthru
      _
    %v42 = vld [vmem:[#allocation2] sm:$0xff]
    %v43 = vld [vmem:[#allocation5] sm:$0xff]
    %v44 = vld [vmem:[#allocation5 + $0x8] sm:$0xff]
    %v45 = vld [vmem:[#allocation5 + $0x10] sm:$0xff]
    %v46 = vld [vmem:[#allocation5 + $0x18] sm:$0xff]
    %v47 = vld [vmem:[#allocation5 + $0x20] sm:$0xff]
    %v48 = vld [vmem:[#allocation5 + $0x28] sm:$0xff]
    %v49 = vld [vmem:[#allocation5 + $0x30] sm:$0xff]
    %v50 = vld [vmem:[#allocation5 + $0x38] sm:$0xff]
    %v51 = vld [vmem:[#allocation5 + $0x40] sm:$0xff]
    %v52 = vld [vmem:[#allocation5 + $0x48] sm:$0xff]
    %v53 = vld [vmem:[#allocation5 + $0x50] sm:$0xff]
    %v54 = vld [vmem:[#allocation5 + $0x58] sm:$0xff]
    %v55 = vld [vmem:[#allocation5 + $0x60] sm:$0xff]
    %v56 = vld [vmem:[#allocation5 + $0x68] sm:$0xff]
    %v57 = vld [vmem:[#allocation5 + $0x70] sm:$0xff]
    %v58 = vld [vmem:[#allocation5 + $0x78] sm:$0xff]
    %59 = vmatpush.msra.mxu0 %v58
    %60 = vmatpush.msra.mxu0 %v57
    %61 = vmatpush.msra.mxu0 %v56
    %62 = vmatpush.msra.mxu0 %v55
    %63 = vmatpush.msra.mxu0 %v54
    %64 = vmatpush.msra.mxu0 %v53
    %65 = vmatpush.msra.mxu0 %v52
    %66 = vmatpush.msra.mxu0 %v51
    %67 = vmatpush.msra.mxu0 %v50
    %68 = vmatpush.msra.mxu0 %v49
    %69 = vmatpush.msra.mxu0 %v48
    %70 = vmatpush.msra.mxu0 %v47
    %71 = vmatpush.msra.mxu0 %v46
    %72 = vmatpush.msra.mxu0 %v45
    %73 = vmatpush.msra.mxu0 %v44
    %74 = vmatpush.msra.mxu0 %v43
    %75 = vmatmul.f32.gmra.mxu0 %v42
    %v76 = vpop.f32.mrf.mxu0
    %v77 = vadd.f32 0.0, %v76
    %78 = vdwg.mxu0
    %v79 = vmax.f32 %v77, 0.0
    %80 = vst [vmem:[#allocation7] sm:$0xff] %v79
    // Predicated region
    $region18: #{tpu_custom_call.1} parent=1 // pred_check
      _
    $region19: #{tpu_custom_call.1} parent=1 // pred_check_branch
      %82 = sbr.rel (0) target = $region21
    $region20: #{tpu_custom_call.1} parent=1 // pred_region
      %84 = vsyncadd [#allocation4], 0
      %s86 = sshll.u32 [#allocation7], 4
      %s87 = int_to_ptr.vmem [resolvable:$true] %s86
      %s88 = sshll.u32 %s2, 4
      %s89 = int_to_ptr.hbm [resolvable:$true] %s88
      %91 = dma.vmem_to_hbm [thread:$0]  %s87, 128, %s89, [#allocation4]
    $region21: #{tpu_custom_call.1} parent=1 // pred_fallthru
      _
    // Predicated region
    $region22: #{tpu_custom_call.1} parent=1 // pred_check
      _
    $region23: #{tpu_custom_call.1} parent=1 // pred_check_branch
      %93 = sbr.rel (0) target = $region25
    $region24: #{tpu_custom_call.1} parent=1 // pred_region
      %95 = dma.done [#allocation4], 128
    $region25: #{tpu_custom_call.1} parent=1 // pred_fallthru
      _
    %96 = vsyncpa [#allocation3], 1
    %97 = vsyncpa [#allocation6], 1
    %98 = vsyncpa [#allocation4], 1

</llo_original>
